<compile_context>
chip_gen: v5e
topology: v5e:2x2
jax: 0.10.0
libtpu: 0.0.40
codegen_flags: <defaults>
</compile_context>

<pallas_src>
import jax
import jax.numpy as jnp
from jax.experimental import pallas as pl
from jax.experimental.pallas import tpu as pltpu


def _actnorm_kernel(x_ref, loc_ref, scale_ref, y_ref):
    # x_ref/y_ref: (RB, TL) tile; loc_ref/scale_ref: (RB, 1) per-row params
    # (lane-broadcast). Pure streaming elementwise hot path.
    y_ref[...] = (scale_ref[...] * (x_ref[...] + loc_ref[...])).astype(y_ref.dtype)


def _largest_aligned_divisor(n, align, cap):
    """Largest d <= cap with d % align == 0 and n % d == 0; fall back to n."""
    best = None
    d = align
    cap = min(cap, n)
    while d <= cap:
        if n % d == 0:
            best = d
        d += align
    return best if best is not None else n


def actnorm_forward(x, loc, scale):
    """x: (N, C, H, W); loc, scale: (1, C, 1, 1).  Returns (y, log_det)."""
    N, C, H, W = x.shape
    R, L = N * C, H * W
    itemsize = jnp.dtype(x.dtype).itemsize

    # Native-layout 2-D view (free, contiguous) + per-row params.
    x2 = x.reshape(R, L)
    loc2 = jnp.tile(loc.reshape(C, 1), (N, 1)).astype(x.dtype)      # (R, 1)
    scale2 = jnp.tile(scale.reshape(C, 1), (N, 1)).astype(x.dtype)  # (R, 1)

    # log-det: tiny C-element reduction, done in plain JAX (keeps the kernel
    # pure streaming and the grid fully parallel).
    log_det = jnp.sum(jnp.log(jnp.abs(scale.astype(jnp.float32)))) * float(H * W)

    # Sublane alignment: 8 rows for f32, 16 for bf16, 32 for int8.
    sub_align = max(8, 32 // itemsize)

    # If the row count isn't sublane-aligned, fold part of the spatial axis
    # into rows so vregs stay full (params repeat accordingly; still tiny).
    if R % sub_align != 0:
        for s in range(2, sub_align + 1):
            if (R * s) % sub_align == 0 and L % s == 0 and (L // s) % 128 == 0:
                R, L = R * s, L // s
                x2 = x2.reshape(R, L)
                loc2 = jnp.repeat(loc2, s, axis=0)
                scale2 = jnp.repeat(scale2, s, axis=0)
                break

    # Block sizing: target ~2 MiB per block -> double-buffered in+out (~4x)
    # stays under the 16 MiB v5e scoped default and well under v6e/v7x limits,
    # while amortizing the ~0.35 us per-grid-step overhead.
    target_elems = (2 * 1024 * 1024) // itemsize
    row_block = _largest_aligned_divisor(R, sub_align, 1024)
    lane_cap = max(128, target_elems // max(row_block, 1))
    lane_block = _largest_aligned_divisor(L, 128, lane_cap)

    grid = (R // row_block, L // lane_block)

    y2 = pl.pallas_call(
        _actnorm_kernel,
        out_shape=jax.ShapeDtypeStruct((R, L), x.dtype),
        grid=grid,
        in_specs=[
            pl.BlockSpec((row_block, lane_block), lambda i, j: (i, j)),
            pl.BlockSpec((row_block, 1), lambda i, j: (i, 0)),
            pl.BlockSpec((row_block, 1), lambda i, j: (i, 0)),
        ],
        out_specs=pl.BlockSpec((row_block, lane_block), lambda i, j: (i, j)),
        compiler_params=pltpu.CompilerParams(
            dimension_semantics=("parallel", "parallel"),
        ),
    )(x2, loc2, scale2)

    # Free view back to NCHW (no transpose needed).
    return y2.reshape(N, C, H, W), log_det


if __name__ == "__main__":
    key = jax.random.PRNGKey(0)
    kx, kl, ks = jax.random.split(key, 3)

    N, C, H, W = 2, 4, 16, 16
    x = jax.random.normal(kx, (N, C, H, W), dtype=jnp.float32)

    # Deterministic non-trivial parameters (shapes match nn.Parameter in __init__).
    loc = 0.1 * jax.random.normal(kl, (1, C, 1, 1), dtype=jnp.float32)
    scale = jnp.exp(0.1 * jax.random.normal(ks, (1, C, 1, 1), dtype=jnp.float32))

    y, log_det = actnorm_forward(x, loc, scale)
    jax.block_until_ready((y, log_det))

    # Pure-JAX reference check.
    y_ref = scale * (x + loc)
    ld_ref = jnp.sum(jnp.log(jnp.abs(scale))) * H * W
    assert y.shape == (N, C, H, W)
    assert jnp.allclose(y, y_ref, atol=1e-5, rtol=1e-5)
    assert jnp.allclose(log_det, ld_ref, atol=1e-5, rtol=1e-5)

    print("KERNEL_OK")
</pallas_src>

<mosaic_0001>
module attributes {stable_mosaic.version = 11 : i64} {
  func.func @_actnorm_kernel(%arg0: i32, %arg1: i32, %arg2: memref<8x256xf32, #tpu.memory_space<vmem>>, %arg3: memref<8x1xf32, #tpu.memory_space<vmem>>, %arg4: memref<8x1xf32, #tpu.memory_space<vmem>>, %arg5: memref<8x256xf32, #tpu.memory_space<vmem>>) attributes {dimension_semantics = [#tpu.dimension_semantics<parallel>, #tpu.dimension_semantics<parallel>], iteration_bounds = array<i64: 1, 1>, scalar_prefetch = 0 : i64, scratch_operands = 0 : i64, tpu.core_type = #tpu.core_type<tc>, window_params = [{transform_indices = @transform_0, window_bounds = array<i64: 8, 256>}, {transform_indices = @transform_1, window_bounds = array<i64: 8, 1>}, {transform_indices = @transform_2, window_bounds = array<i64: 8, 1>}, {transform_indices = @transform_3, window_bounds = array<i64: 8, 256>}]} {
    %c0 = arith.constant 0 : index
    %c0_0 = arith.constant 0 : index
    %0 = vector.load %arg4[%c0, %c0_0] : memref<8x1xf32, #tpu.memory_space<vmem>>, vector<8x1xf32>
    %c0_1 = arith.constant 0 : index
    %c0_2 = arith.constant 0 : index
    %1 = vector.load %arg2[%c0_1, %c0_2] : memref<8x256xf32, #tpu.memory_space<vmem>>, vector<8x256xf32>
    %c0_3 = arith.constant 0 : index
    %c0_4 = arith.constant 0 : index
    %2 = vector.load %arg3[%c0_3, %c0_4] : memref<8x1xf32, #tpu.memory_space<vmem>>, vector<8x1xf32>
    %3 = vector.broadcast %2 : vector<8x1xf32> to vector<8x256xf32>
    %4 = arith.addf %1, %3 : vector<8x256xf32>
    %5 = vector.broadcast %0 : vector<8x1xf32> to vector<8x256xf32>
    %6 = arith.mulf %5, %4 : vector<8x256xf32>
    %c0_5 = arith.constant 0 : index
    %c0_6 = arith.constant 0 : index
    %7 = vector.load %arg5[%c0_5, %c0_6] : memref<8x256xf32, #tpu.memory_space<vmem>>, vector<8x256xf32>
    tpu.vector_store %arg5[%c0_5, %c0_6], %6 {strides = array<i32>} : memref<8x256xf32, #tpu.memory_space<vmem>>, vector<8x256xf32>,
    return
  }
  func.func @transform_0(%arg0: i32, %arg1: i32) -> (i32, i32) {
    %c0_i32 = arith.constant 0 : i32
    return %arg0, %arg1 : i32, i32
  }
  func.func @transform_1(%arg0: i32, %arg1: i32) -> (i32, i32) {
    %c0_i32 = arith.constant 0 : i32
    %c0_i32_0 = arith.constant 0 : i32
    return %arg0, %c0_i32 : i32, i32
  }
  func.func @transform_2(%arg0: i32, %arg1: i32) -> (i32, i32) {
    %c0_i32 = arith.constant 0 : i32
    %c0_i32_0 = arith.constant 0 : i32
    return %arg0, %c0_i32 : i32, i32
  }
  func.func @transform_3(%arg0: i32, %arg1: i32) -> (i32, i32) {
    %c0_i32 = arith.constant 0 : i32
    return %arg0, %arg1 : i32, i32
  }
}

</mosaic_0001>

<llo_original>
// kernel: tpu_custom_call.1
$region0: #{tpu_custom_call.1}
  #allocation0 [shape = 'u32[]', space=smem, size = 0x4, offset = 0x4, fixed_abs, tag = 'smem constant byte address 0x4 - core index']
  #allocation1 [shape = 'u32[72,128]{1,0:T(1,128)}', space=vmem, size = 0x9000, scoped, tag = 'internal scratch']
  %s0 = inlined_call_operand.vmem [shape: f32[8,256], index: 0, kind: input, shape index: {}]
  %s1 = inlined_call_operand.vmem [shape: f32[8,1], index: 1, kind: input, shape index: {}]
  %s2 = inlined_call_operand.vmem [shape: f32[8,1], index: 2, kind: input, shape index: {}]
  %s3 = inlined_call_operand.hbm [shape: f32[8,256], index: 3, kind: output, shape index: {}]
  %s4 = sld [smem:[#allocation0]]
  $region22: #{tpu_custom_call.1} parent=0
    _
  %s6 = ssub.s32 1, %s4
  %s7 = scalar_select 0, %s6, %s4
  $region1: #{tpu_custom_call.1} parent=0
    #allocation2 [shape = 'u8[8192]{0}', space=vmem, size = 0x2000, scoped, tag = 'output window, operand 0, single buffered']
    #allocation3 [shape = 's32[1]{0}', space=sflag, size = 0x4, scoped, tag = 'scoped memory for tpu_custom_call.1']
    %8 = vsyncpa [#allocation3], 0
    // Predicated region
    $region2: #{tpu_custom_call.1} parent=1 // pred_check
      _
    $region3: #{tpu_custom_call.1} parent=1 // pred_check_branch
      %10 = sbr.rel (0) target = $region5
    $region4: #{tpu_custom_call.1} parent=1 // pred_region
      _
    $region5: #{tpu_custom_call.1} parent=1 // pred_fallthru
      _
    // Predicated region
    $region6: #{tpu_custom_call.1} parent=1 // pred_check
      _
    $region7: #{tpu_custom_call.1} parent=1 // pred_check_branch
      %12 = sbr.rel (0) target = $region9
    $region8: #{tpu_custom_call.1} parent=1 // pred_region
      _
    $region9: #{tpu_custom_call.1} parent=1 // pred_fallthru
      _
    // Predicated region
    $region10: #{tpu_custom_call.1} parent=1 // pred_check
      _
    $region11: #{tpu_custom_call.1} parent=1 // pred_check_branch
      %14 = sbr.rel (0) target = $region13
    $region12: #{tpu_custom_call.1} parent=1 // pred_region
      _
    $region13: #{tpu_custom_call.1} parent=1 // pred_fallthru
      _
    %v15 = vld [vmem:[%s2] sm:$0xff]
    %v16 = vld [vmem:[%s0] sm:$0xff]
    %v17 = vld [vmem:[%s0 + $0x8] sm:$0xff]
    %v18 = vld [vmem:[%s1] sm:$0xff]
    %20 = vset.pattern.permute.xlu0 0
    %21 = vperm.xlu0 %20, %v18
    %v22 = vpop.permute.xlu0 %21
    %v24 = vadd.f32 %v16, %v22
    %v25 = vadd.f32 %v17, %v22
    %27 = vset.pattern.permute.xlu0 0
    %28 = vperm.xlu0 %27, %v15
    %v29 = vpop.permute.xlu0 %28
    %v31 = vmul.f32 %v29, %v24
    %v32 = vmul.f32 %v29, %v25
    %33 = vst [vmem:[#allocation2] sm:$0xff] %v31
    %34 = vst [vmem:[#allocation2 + $0x8] sm:$0xff] %v32
    // Predicated region
    $region14: #{tpu_custom_call.1} parent=1 // pred_check
      _
    $region15: #{tpu_custom_call.1} parent=1 // pred_check_branch
      %36 = sbr.rel (0) target = $region17
    $region16: #{tpu_custom_call.1} parent=1 // pred_region
      %38 = vsyncadd [#allocation3], 0
      %s40 = sshll.u32 [#allocation2], 4
      %s41 = int_to_ptr.vmem [resolvable:$true] %s40
      %s42 = sshll.u32 %s3, 4
      %s43 = int_to_ptr.hbm [resolvable:$true] %s42
      %45 = dma.vmem_to_hbm [thread:$0]  %s41, 256, %s43, [#allocation3]
    $region17: #{tpu_custom_call.1} parent=1 // pred_fallthru
      _
    // Predicated region
    $region18: #{tpu_custom_call.1} parent=1 // pred_check
      _
    $region19: #{tpu_custom_call.1} parent=1 // pred_check_branch
      %47 = sbr.rel (0) target = $region21
    $region20: #{tpu_custom_call.1} parent=1 // pred_region
      %49 = dma.done [#allocation3], 256
    $region21: #{tpu_custom_call.1} parent=1 // pred_fallthru
      _
    %50 = vsyncpa [#allocation3], 1

</llo_original>
